<compile_context>
chip_gen: v6e
topology: v6e:2x2x1
jax: 0.10.0
libtpu: 0.0.40
codegen_flags: <defaults>
</compile_context>

<pallas_src>
import jax
import jax.numpy as jnp
from jax.experimental import pallas as pl
from jax.experimental.pallas import tpu as pltpu

HIDDEN = 128


def _round_up(n, m):
    return ((n + m - 1) // m) * m


def dqn_kernel(x_ref, w1_ref, b1_ref, w2_ref, b2_ref, w3_ref, b3_ref, o_ref):
    """One batch tile, all three layers fused.

    Layer 1 (contraction over S, tiny) runs as S unrolled broadcast-FMAs on the
    VPU in f32 -> no input padding, no wasted MXU columns.  Layers 2/3 run on
    the MXU with bf16 operands and f32 accumulation.  tanh is done in f32
    (v5e-safe) and the result is cast to bf16 right away to halve the live set.
    """
    x = x_ref[...]                                   # (Bt, S)  f32
    w1 = w1_ref[...]                                 # (S, H)   f32
    S = w1.shape[0]                                  # static

    a1 = b1_ref[...] + x[:, 0:1] * w1[0:1, :]        # (Bt, H) f32
    for s in range(1, S):                            # S is small & static -> unrolled
        a1 = a1 + x[:, s:s + 1] * w1[s:s + 1, :]
    h1 = jnp.tanh(a1).astype(jnp.bfloat16)

    a2 = jnp.dot(h1, w2_ref[...], preferred_element_type=jnp.float32) + b2_ref[...]
    h2 = jnp.tanh(a2).astype(jnp.bfloat16)

    out = jnp.dot(h2, w3_ref[...], preferred_element_type=jnp.float32) + b3_ref[...]
    o_ref[...] = out                                 # (Bt, A) f32 — only real logits hit HBM


def prepare_params(params):
    """One-time conversion of PyTorch-convention Linear params ((out, in) weights)
    to kernel layout.  Returns arrays only (jit-friendly pytree):
      w1 -> (S, H) f32  (layer 1 is a VPU contraction; exact, no padding)
      w2 -> (H, H) bf16, w3 -> (H, A) bf16  (MXU operands, f32 accumulation)
      biases -> (1, .) f32
    """
    H, S = params["w1"].shape
    A = params["w3"].shape[0]
    assert H == HIDDEN and params["w2"].shape == (H, H)
    return {
        "w1": params["w1"].T.astype(jnp.float32),
        "b1": params["b1"].astype(jnp.float32)[None, :],
        "w2": params["w2"].T.astype(jnp.bfloat16),
        "b2": params["b2"].astype(jnp.float32)[None, :],
        "w3": params["w3"].T.astype(jnp.bfloat16),
        "b3": params["b3"].astype(jnp.float32)[None, :],
    }


def _pick_batch_tile(B):
    if B <= 128:
        # Tiny per-env-step acting path: single tile, sublane aligned.
        return _round_up(B, 8)
    # Replay-batch path: big tiles (up to 512 rows) amortize the ~0.35 us/step
    # grid overhead, but always >= 2 grid steps so the "parallel" batch axis can
    # be sharded across both TensorCores on v7x.  Multiple of 16 keeps the bf16
    # intermediates sublane-aligned when tiled.
    return min(512, _round_up((B + 1) // 2, 16))


@jax.jit
def dqn_forward(x, prepped):
    """Fused DQN forward: Q = W3 tanh(W2 tanh(W1 x + b1) + b2) + b3."""
    w1, b1 = prepped["w1"], prepped["b1"]
    w2, b2 = prepped["w2"], prepped["b2"]
    w3, b3 = prepped["w3"], prepped["b3"]

    B, S = x.shape
    H = w1.shape[1]
    A = w3.shape[1]

    b_tile = _pick_batch_tile(B)
    B_pad = _round_up(B, b_tile)
    grid = (B_pad // b_tile,)

    # x stays (B, S) f32 in HBM; only row-pad to a tile multiple (no lane padding,
    # no bf16 copy materialized).
    xf = x.astype(jnp.float32)
    xp = xf if B_pad == B else jnp.pad(xf, ((0, B_pad - B), (0, 0)))

    const2d = lambda i: (0, 0)   # grid-invariant: DMA'd once, VMEM-resident
    in_specs = [
        pl.BlockSpec((b_tile, S), lambda i: (i, 0)),   # x: tiled over batch
        pl.BlockSpec((S, H), const2d),
        pl.BlockSpec((1, H), const2d),
        pl.BlockSpec((H, H), const2d),
        pl.BlockSpec((1, H), const2d),
        pl.BlockSpec((H, A), const2d),
        pl.BlockSpec((1, A), const2d),
    ]
    out_specs = pl.BlockSpec((b_tile, A), lambda i: (i, 0))

    flops = 2 * B_pad * (S * H + H * H + H * A)
    transcendentals = 2 * B_pad * H
    bytes_accessed = (
        B_pad * S * 4                                  # x
        + w1.size * 4 + w2.size * 2 + w3.size * 2      # weights
        + (b1.size + b2.size + b3.size) * 4            # biases
        + B_pad * A * 4                                # output
    )

    out = pl.pallas_call(
        dqn_kernel,
        out_shape=jax.ShapeDtypeStruct((B_pad, A), jnp.float32),
        grid=grid,
        in_specs=in_specs,
        out_specs=out_specs,
        compiler_params=pltpu.CompilerParams(
            dimension_semantics=("parallel",)),        # batch axis -> v7x dual TC
        cost_estimate=pl.CostEstimate(
            flops=flops, transcendentals=transcendentals,
            bytes_accessed=bytes_accessed),
    )(xp, w1, b1, w2, b2, w3, b3)

    return out if B_pad == B else out[:B]


def init_params(key, state_space_dim, action_space_dim, hidden=HIDDEN):
    # Deterministic synthetic init (PyTorch-shaped weights: (out, in)).
    ks = jax.random.split(key, 6)

    def u(k, shape, fan_in):
        bound = 1.0 / jnp.sqrt(fan_in)
        return jax.random.uniform(k, shape, jnp.float32, -bound, bound)

    return {
        "w1": u(ks[0], (hidden, state_space_dim), state_space_dim),
        "b1": u(ks[1], (hidden,), state_space_dim),
        "w2": u(ks[2], (hidden, hidden), hidden),
        "b2": u(ks[3], (hidden,), hidden),
        "w3": u(ks[4], (action_space_dim, hidden), hidden),
        "b3": u(ks[5], (action_space_dim,), hidden),
    }


if __name__ == "__main__":
    key = jax.random.PRNGKey(0)
    k_param, k_x1, k_x2 = jax.random.split(key, 3)

    state_space_dim = 4
    action_space_dim = 2

    params = init_params(k_param, state_space_dim, action_space_dim)
    prepped = prepare_params(params)   # one-time transpose / bf16 cast

    def ref_forward(xx):
        h = jnp.tanh(xx @ params["w1"].T + params["b1"])
        h = jnp.tanh(h @ params["w2"].T + params["b2"])
        return h @ params["w3"].T + params["b3"]

    # 1) Tiny acting-path batch: single tile, grid=(1,).
    x_small = jax.random.normal(k_x1, (8, state_space_dim), jnp.float32)
    out_small = jax.block_until_ready(dqn_forward(x_small, prepped))
    ref_small = ref_forward(x_small)
    assert out_small.shape == (8, action_space_dim)
    assert jnp.allclose(out_small, ref_small, atol=2e-2, rtol=2e-2), (
        f"max abs diff {jnp.max(jnp.abs(out_small - ref_small))}")

    # 2) Replay-batch path: exercises row padding + multi-step "parallel" grid.
    x_big = jax.random.normal(k_x2, (300, state_space_dim), jnp.float32)
    out_big = jax.block_until_ready(dqn_forward(x_big, prepped))
    ref_big = ref_forward(x_big)
    assert out_big.shape == (300, action_space_dim)
    assert jnp.allclose(out_big, ref_big, atol=2e-2, rtol=2e-2), (
        f"max abs diff {jnp.max(jnp.abs(out_big - ref_big))}")

    print("KERNEL_OK")
</pallas_src>

<mosaic_0001>
module attributes {stable_mosaic.version = 11 : i64} {
  func.func @dqn_kernel(%arg0: i32, %arg1: memref<8x4xf32, #tpu.memory_space<vmem>>, %arg2: memref<4x128xf32, #tpu.memory_space<vmem>>, %arg3: memref<1x128xf32, #tpu.memory_space<vmem>>, %arg4: memref<128x128xbf16, #tpu.memory_space<vmem>>, %arg5: memref<1x128xf32, #tpu.memory_space<vmem>>, %arg6: memref<128x2xbf16, #tpu.memory_space<vmem>>, %arg7: memref<1x2xf32, #tpu.memory_space<vmem>>, %arg8: memref<8x2xf32, #tpu.memory_space<vmem>>) attributes {dimension_semantics = [#tpu.dimension_semantics<parallel>], iteration_bounds = array<i64: 1>, scalar_prefetch = 0 : i64, scratch_operands = 0 : i64, tpu.core_type = #tpu.core_type<tc>, window_params = [{transform_indices = @transform_0, window_bounds = array<i64: 8, 4>}, {pipeline_mode = #tpu.pipeline_mode<synchronous>, transform_indices = @transform_1, window_bounds = array<i64: 4, 128>}, {pipeline_mode = #tpu.pipeline_mode<synchronous>, transform_indices = @transform_2, window_bounds = array<i64: 1, 128>}, {pipeline_mode = #tpu.pipeline_mode<synchronous>, transform_indices = @transform_3, window_bounds = array<i64: 128, 128>}, {pipeline_mode = #tpu.pipeline_mode<synchronous>, transform_indices = @transform_4, window_bounds = array<i64: 1, 128>}, {pipeline_mode = #tpu.pipeline_mode<synchronous>, transform_indices = @transform_5, window_bounds = array<i64: 128, 2>}, {pipeline_mode = #tpu.pipeline_mode<synchronous>, transform_indices = @transform_6, window_bounds = array<i64: 1, 2>}, {transform_indices = @transform_7, window_bounds = array<i64: 8, 2>}]} {
    %c0 = arith.constant 0 : index
    %c0_0 = arith.constant 0 : index
    %0 = vector.load %arg1[%c0, %c0_0] : memref<8x4xf32, #tpu.memory_space<vmem>>, vector<8x4xf32>
    %c0_1 = arith.constant 0 : index
    %c0_2 = arith.constant 0 : index
    %1 = vector.load %arg2[%c0_1, %c0_2] : memref<4x128xf32, #tpu.memory_space<vmem>>, vector<4x128xf32>
    %c0_3 = arith.constant 0 : index
    %c0_4 = arith.constant 0 : index
    %2 = vector.load %arg3[%c0_3, %c0_4] : memref<1x128xf32, #tpu.memory_space<vmem>>, vector<1x128xf32>
    %3 = vector.extract_strided_slice %0 {offsets = [0, 0], sizes = [8, 1], strides = [1, 1]} : vector<8x4xf32> to vector<8x1xf32>
    %4 = vector.extract_strided_slice %1 {offsets = [0, 0], sizes = [1, 128], strides = [1, 1]} : vector<4x128xf32> to vector<1x128xf32>
    %5 = vector.broadcast %3 : vector<8x1xf32> to vector<8x128xf32>
    %6 = vector.broadcast %4 : vector<1x128xf32> to vector<8x128xf32>
    %7 = arith.mulf %5, %6 : vector<8x128xf32>
    %8 = vector.broadcast %2 : vector<1x128xf32> to vector<8x128xf32>
    %9 = arith.addf %8, %7 : vector<8x128xf32>
    %10 = vector.extract_strided_slice %0 {offsets = [0, 1], sizes = [8, 1], strides = [1, 1]} : vector<8x4xf32> to vector<8x1xf32>
    %11 = vector.extract_strided_slice %1 {offsets = [1, 0], sizes = [1, 128], strides = [1, 1]} : vector<4x128xf32> to vector<1x128xf32>
    %12 = vector.broadcast %10 : vector<8x1xf32> to vector<8x128xf32>
    %13 = vector.broadcast %11 : vector<1x128xf32> to vector<8x128xf32>
    %14 = arith.mulf %12, %13 : vector<8x128xf32>
    %15 = arith.addf %9, %14 : vector<8x128xf32>
    %16 = vector.extract_strided_slice %0 {offsets = [0, 2], sizes = [8, 1], strides = [1, 1]} : vector<8x4xf32> to vector<8x1xf32>
    %17 = vector.extract_strided_slice %1 {offsets = [2, 0], sizes = [1, 128], strides = [1, 1]} : vector<4x128xf32> to vector<1x128xf32>
    %18 = vector.broadcast %16 : vector<8x1xf32> to vector<8x128xf32>
    %19 = vector.broadcast %17 : vector<1x128xf32> to vector<8x128xf32>
    %20 = arith.mulf %18, %19 : vector<8x128xf32>
    %21 = arith.addf %15, %20 : vector<8x128xf32>
    %22 = vector.extract_strided_slice %0 {offsets = [0, 3], sizes = [8, 1], strides = [1, 1]} : vector<8x4xf32> to vector<8x1xf32>
    %23 = vector.extract_strided_slice %1 {offsets = [3, 0], sizes = [1, 128], strides = [1, 1]} : vector<4x128xf32> to vector<1x128xf32>
    %24 = vector.broadcast %22 : vector<8x1xf32> to vector<8x128xf32>
    %25 = vector.broadcast %23 : vector<1x128xf32> to vector<8x128xf32>
    %26 = arith.mulf %24, %25 : vector<8x128xf32>
    %27 = arith.addf %21, %26 : vector<8x128xf32>
    %28 = math.tanh %27 : vector<8x128xf32>
    %29 = arith.truncf %28 : vector<8x128xf32> to vector<8x128xbf16>
    %c0_5 = arith.constant 0 : index
    %c0_6 = arith.constant 0 : index
    %30 = vector.load %arg4[%c0_5, %c0_6] : memref<128x128xbf16, #tpu.memory_space<vmem>>, vector<128x128xbf16>
    %cst = arith.constant dense<0.000000e+00> : vector<8x128xf32>
    %31 = tpu.matmul %29, %30, %cst {dimension_numbers = #tpu.dot_dimension_numbers<[1], [0], [0], [1], [0, 0, 1, 1], [], []>} : vector<8x128xbf16>, vector<128x128xbf16>, vector<8x128xf32> -> vector<8x128xf32>
    %c0_7 = arith.constant 0 : index
    %c0_8 = arith.constant 0 : index
    %32 = vector.load %arg5[%c0_7, %c0_8] : memref<1x128xf32, #tpu.memory_space<vmem>>, vector<1x128xf32>
    %33 = vector.broadcast %32 : vector<1x128xf32> to vector<8x128xf32>
    %34 = arith.addf %31, %33 : vector<8x128xf32>
    %35 = math.tanh %34 : vector<8x128xf32>
    %36 = arith.truncf %35 : vector<8x128xf32> to vector<8x128xbf16>
    %c0_9 = arith.constant 0 : index
    %c0_10 = arith.constant 0 : index
    %37 = vector.load %arg6[%c0_9, %c0_10] : memref<128x2xbf16, #tpu.memory_space<vmem>>, vector<128x2xbf16>
    %cst_11 = arith.constant dense<0.000000e+00> : vector<8x2xf32>
    %38 = tpu.matmul %36, %37, %cst_11 {dimension_numbers = #tpu.dot_dimension_numbers<[1], [0], [0], [1], [0, 0, 1, 1], [], []>} : vector<8x128xbf16>, vector<128x2xbf16>, vector<8x2xf32> -> vector<8x2xf32>
    %c0_12 = arith.constant 0 : index
    %c0_13 = arith.constant 0 : index
    %39 = vector.load %arg7[%c0_12, %c0_13] : memref<1x2xf32, #tpu.memory_space<vmem>>, vector<1x2xf32>
    %40 = vector.broadcast %39 : vector<1x2xf32> to vector<8x2xf32>
    %41 = arith.addf %38, %40 : vector<8x2xf32>
    %c0_14 = arith.constant 0 : index
    %c0_15 = arith.constant 0 : index
    %42 = vector.load %arg8[%c0_14, %c0_15] : memref<8x2xf32, #tpu.memory_space<vmem>>, vector<8x2xf32>
    tpu.vector_store %arg8[%c0_14, %c0_15], %41 {strides = array<i32>} : memref<8x2xf32, #tpu.memory_space<vmem>>, vector<8x2xf32>,
    return
  }
  func.func @transform_0(%arg0: i32) -> (i32, i32) {
    %c0_i32 = arith.constant 0 : i32
    %c0_i32_0 = arith.constant 0 : i32
    return %arg0, %c0_i32 : i32, i32
  }
  func.func @transform_1(%arg0: i32) -> (i32, i32) {
    %c0_i32 = arith.constant 0 : i32
    %c0_i32_0 = arith.constant 0 : i32
    %c0_i32_1 = arith.constant 0 : i32
    return %c0_i32, %c0_i32_0 : i32, i32
  }
  func.func @transform_2(%arg0: i32) -> (i32, i32) {
    %c0_i32 = arith.constant 0 : i32
    %c0_i32_0 = arith.constant 0 : i32
    %c0_i32_1 = arith.constant 0 : i32
    return %c0_i32, %c0_i32_0 : i32, i32
  }
  func.func @transform_3(%arg0: i32) -> (i32, i32) {
    %c0_i32 = arith.constant 0 : i32
    %c0_i32_0 = arith.constant 0 : i32
    %c0_i32_1 = arith.constant 0 : i32
    return %c0_i32, %c0_i32_0 : i32, i32
  }
  func.func @transform_4(%arg0: i32) -> (i32, i32) {
    %c0_i32 = arith.constant 0 : i32
    %c0_i32_0 = arith.constant 0 : i32
    %c0_i32_1 = arith.constant 0 : i32
    return %c0_i32, %c0_i32_0 : i32, i32
  }
  func.func @transform_5(%arg0: i32) -> (i32, i32) {
    %c0_i32 = arith.constant 0 : i32
    %c0_i32_0 = arith.constant 0 : i32
    %c0_i32_1 = arith.constant 0 : i32
    return %c0_i32, %c0_i32_0 : i32, i32
  }
  func.func @transform_6(%arg0: i32) -> (i32, i32) {
    %c0_i32 = arith.constant 0 : i32
    %c0_i32_0 = arith.constant 0 : i32
    %c0_i32_1 = arith.constant 0 : i32
    return %c0_i32, %c0_i32_0 : i32, i32
  }
  func.func @transform_7(%arg0: i32) -> (i32, i32) {
    %c0_i32 = arith.constant 0 : i32
    %c0_i32_0 = arith.constant 0 : i32
    return %arg0, %c0_i32 : i32, i32
  }
}

</mosaic_0001>

<llo_original>
// kernel: dqn_forward.1
$region0: #{dqn_forward.1}
  #allocation0 [shape = 'u32[]', space=smem, size = 0x4, offset = 0x4, fixed_abs, tag = 'smem constant byte address 0x4 - core index']
  #allocation1 [shape = 'u32[144,128]{1,0:T(1,128)}', space=vmem, size = 0x12000, scoped, tag = 'internal scratch']
  %s0 = inlined_call_operand.vmem [shape: f32[8,4], index: 0, kind: input, shape index: {}]
  %s1 = inlined_call_operand.vmem [shape: f32[4,128], index: 1, kind: input, shape index: {}]
  %s2 = inlined_call_operand.vmem [shape: f32[1,128], index: 2, kind: input, shape index: {}]
  %s3 = inlined_call_operand.vmem [shape: bf16[128,128], index: 3, kind: input, shape index: {}]
  %s4 = inlined_call_operand.vmem [shape: f32[1,128], index: 4, kind: input, shape index: {}]
  %s5 = inlined_call_operand.vmem [shape: bf16[128,2], index: 5, kind: input, shape index: {}]
  %s6 = inlined_call_operand.vmem [shape: f32[1,2], index: 6, kind: input, shape index: {}]
  %s7 = inlined_call_operand.vmem [shape: f32[8,2], index: 7, kind: output, shape index: {}]
  %s8 = sld [smem:[#allocation0]]
  $region38: #{dqn_forward.1} parent=0
    _
  %s10 = ssub.s32 1, %s8
  %s11 = scalar_select 0, %s10, %s8
  // Predicated region
  $region2: #{dqn_forward.1} parent=0 // pred_check
    _
  $region3: #{dqn_forward.1} parent=0 // pred_check_branch
    %13 = sbr.rel (0) target = $region5
  $region4: #{dqn_forward.1} parent=0 // pred_region
    _
  $region5: #{dqn_forward.1} parent=0 // pred_fallthru
    _
  // Predicated region
  $region6: #{dqn_forward.1} parent=0 // pred_check
    _
  $region7: #{dqn_forward.1} parent=0 // pred_check_branch
    %15 = sbr.rel (0) target = $region9
  $region8: #{dqn_forward.1} parent=0 // pred_region
    _
  $region9: #{dqn_forward.1} parent=0 // pred_fallthru
    _
  // Predicated region
  $region10: #{dqn_forward.1} parent=0 // pred_check
    _
  $region11: #{dqn_forward.1} parent=0 // pred_check_branch
    %17 = sbr.rel (0) target = $region13
  $region12: #{dqn_forward.1} parent=0 // pred_region
    _
  $region13: #{dqn_forward.1} parent=0 // pred_fallthru
    _
  // Predicated region
  $region14: #{dqn_forward.1} parent=0 // pred_check
    _
  $region15: #{dqn_forward.1} parent=0 // pred_check_branch
    %19 = sbr.rel (0) target = $region17
  $region16: #{dqn_forward.1} parent=0 // pred_region
    _
  $region17: #{dqn_forward.1} parent=0 // pred_fallthru
    _
  // Predicated region
  $region18: #{dqn_forward.1} parent=0 // pred_check
    _
  $region19: #{dqn_forward.1} parent=0 // pred_check_branch
    %21 = sbr.rel (0) target = $region21
  $region20: #{dqn_forward.1} parent=0 // pred_region
    _
  $region21: #{dqn_forward.1} parent=0 // pred_fallthru
    _
  // Predicated region
  $region22: #{dqn_forward.1} parent=0 // pred_check
    _
  $region23: #{dqn_forward.1} parent=0 // pred_check_branch
    %23 = sbr.rel (0) target = $region25
  $region24: #{dqn_forward.1} parent=0 // pred_region
    _
  $region25: #{dqn_forward.1} parent=0 // pred_fallthru
    _
  // Predicated region
  $region26: #{dqn_forward.1} parent=0 // pred_check
    _
  $region27: #{dqn_forward.1} parent=0 // pred_check_branch
    %25 = sbr.rel (0) target = $region29
  $region28: #{dqn_forward.1} parent=0 // pred_region
    _
  $region29: #{dqn_forward.1} parent=0 // pred_fallthru
    _
  %v27 = vld [vmem:[%s0] sm:$0xff]
  %v28 = vld [vmem:[%s1] sm:$0xf]
  %v29 = vld [vmem:[%s2] sm:$0x1]
  %31 = vset.pattern.permute.xlu0 0
  %32 = vperm.xlu0 %31, %v27
  %v33 = vpop.permute.xlu0 %32
  %v35 = vlaneseq
  %v36 = vshrl.u32 %v35, 7
  %v37 = vsub.s32 0, %v36
  %v38 = vrot.slane %v28, %v37
  %v39 = vmul.f32 %v33, %v38
  %v41 = vlaneseq
  %v42 = vshrl.u32 %v41, 7
  %v43 = vsub.s32 0, %v42
  %v44 = vrot.slane %v29, %v43
  %v46 = vadd.f32 %v44, %v39
  %47 = vset.pattern.permute.xlu0 1
  %48 = vperm.xlu0 %47, %v27
  %v49 = vpop.permute.xlu0 %48
  %v51 = vlaneseq
  %v52 = vshrl.u32 %v51, 7
  %v53 = vsub.s32 1, %v52
  %v54 = vrot.slane %v28, %v53
  %v55 = vmul.f32 %v49, %v54
  %v56 = vadd.f32 %v46, %v55
  %57 = vset.pattern.permute.xlu0 2
  %58 = vperm.xlu0 %57, %v27
  %v59 = vpop.permute.xlu0 %58
  %v61 = vlaneseq
  %v62 = vshrl.u32 %v61, 7
  %v63 = vsub.s32 2, %v62
  %v64 = vrot.slane %v28, %v63
  %v65 = vmul.f32 %v59, %v64
  %v66 = vadd.f32 %v56, %v65
  %67 = vset.pattern.permute.xlu0 3
  %68 = vperm.xlu0 %67, %v27
  %v69 = vpop.permute.xlu0 %68
  %v71 = vlaneseq
  %v72 = vshrl.u32 %v71, 7
  %v73 = vsub.s32 3, %v72
  %v74 = vrot.slane %v28, %v73
  %v75 = vmul.f32 %v69, %v74
  %v76 = vadd.f32 %v66, %v75
  %v77 = vtanh.pop %v76
  %v78 = vpack.c.bf16 %v77, %v77
  %v79 = vld [vmem:[%s3] sm:$0xf]
  %v80 = vld [vmem:[%s3 + $0x4] sm:$0xf]
  %v81 = vld [vmem:[%s3 + $0x8] sm:$0xf]
  %v82 = vld [vmem:[%s3 + $0xc] sm:$0xf]
  %v83 = vld [vmem:[%s3 + $0x10] sm:$0xf]
  %v84 = vld [vmem:[%s3 + $0x14] sm:$0xf]
  %v85 = vld [vmem:[%s3 + $0x18] sm:$0xf]
  %v86 = vld [vmem:[%s3 + $0x1c] sm:$0xf]
  %v87 = vld [vmem:[%s3 + $0x20] sm:$0xf]
  %v88 = vld [vmem:[%s3 + $0x24] sm:$0xf]
  %v89 = vld [vmem:[%s3 + $0x28] sm:$0xf]
  %v90 = vld [vmem:[%s3 + $0x2c] sm:$0xf]
  %v91 = vld [vmem:[%s3 + $0x30] sm:$0xf]
  %v92 = vld [vmem:[%s3 + $0x34] sm:$0xf]
  %v93 = vld [vmem:[%s3 + $0x38] sm:$0xf]
  %v94 = vld [vmem:[%s3 + $0x3c] sm:$0xf]
  %v95 = vld [vmem:[%s4] sm:$0x1]
  %v97 = vlaneseq
  %v98 = vshrl.u32 %v97, 7
  %v99 = vsub.s32 0, %v98
  %v100 = vrot.slane %v95, %v99
  %v118 = vunpack.c.l.b16 %v79
  %v119 = vunpack.c.l.b16 %v80
  %v120 = vunpack.c.l.b16 %v81
  %v121 = vunpack.c.l.b16 %v82
  %v122 = vunpack.c.l.b16 %v83
  %v123 = vunpack.c.l.b16 %v84
  %v124 = vunpack.c.l.b16 %v85
  %v125 = vunpack.c.l.b16 %v86
  %v126 = vunpack.c.l.b16 %v87
  %v127 = vunpack.c.l.b16 %v88
  %v128 = vunpack.c.l.b16 %v89
  %v129 = vunpack.c.l.b16 %v90
  %v130 = vunpack.c.l.b16 %v91
  %v131 = vunpack.c.l.b16 %v92
  %v132 = vunpack.c.l.b16 %v93
  %v133 = vunpack.c.l.b16 %v94
  %v134 = vpack.c.b16 %v119, %v118
  %v135 = vpack.c.b16 %v121, %v120
  %v136 = vpack.c.b16 %v123, %v122
  %v137 = vpack.c.b16 %v125, %v124
  %v138 = vpack.c.b16 %v127, %v126
  %v139 = vpack.c.b16 %v129, %v128
  %v140 = vpack.c.b16 %v131, %v130
  %v141 = vpack.c.b16 %v133, %v132
  %150 = vmatprep.subr.bf16.mxu0 0
  %151 = vmatpush1.bf16.msra.mxu0 %v141
  %152 = vmatprep.subr.bf16.mxu0 0
  %153 = vmatpush1.bf16.msra.mxu0 %v140
  %154 = vmatprep.subr.bf16.mxu0 0
  %155 = vmatpush1.bf16.msra.mxu0 %v139
  %156 = vmatprep.subr.bf16.mxu0 0
  %157 = vmatpush1.bf16.msra.mxu0 %v138
  %158 = vmatprep.subr.bf16.mxu0 0
  %159 = vmatpush1.bf16.msra.mxu0 %v137
  %160 = vmatprep.subr.bf16.mxu0 0
  %161 = vmatpush1.bf16.msra.mxu0 %v136
  %162 = vmatprep.subr.bf16.mxu0 0
  %163 = vmatpush1.bf16.msra.mxu0 %v135
  %164 = vmatprep.subr.bf16.mxu0 0
  %165 = vmatpush1.bf16.msra.mxu0 %v134
  %166 = vmatprep.subr.bf16.mxu0 0
  %167 = vmatpush2.bf16.msra.mxu0 0
  %168 = vmatprep.subr.bf16.mxu0 0
  %169 = vmatpush2.bf16.msra.mxu0 0
  %170 = vmatprep.subr.bf16.mxu0 0
  %171 = vmatpush2.bf16.msra.mxu0 0
  %172 = vmatprep.subr.bf16.mxu0 0
  %173 = vmatpush2.bf16.msra.mxu0 0
  %174 = vmatprep.subr.bf16.mxu0 0
  %175 = vmatpush2.bf16.msra.mxu0 0
  %176 = vmatprep.subr.bf16.mxu0 0
  %177 = vmatpush2.bf16.msra.mxu0 0
  %178 = vmatprep.subr.bf16.mxu0 0
  %179 = vmatpush2.bf16.msra.mxu0 0
  %180 = vmatprep.subr.bf16.mxu0 0
  %181 = vmatpush2.bf16.msra.mxu0 0
  %182 = vmatprep.mubr.bf16.mxu0 0
  %183 = vmatmul.mubr.bf16.gmra.mxu0 %v78
  %v184 = vpop.f32.mrf.mxu0
  %v185 = vadd.f32 %v100, %v184
  %v186 = vpop.f32.mrf.mxu0
  %v187 = vpop.f32.mrf.mxu0
  %v188 = vpop.f32.mrf.mxu0
  %189 = vdwg.mxu0
  %v190 = vtanh.pop %v185
  %v191 = vpack.c.bf16 %v190, %v190
  %v192 = vld [vmem:[%s5] sm:$0xf]
  %v193 = vld [vmem:[%s5 + $0x4] sm:$0xf]
  %v194 = vld [vmem:[%s5 + $0x8] sm:$0xf]
  %v195 = vld [vmem:[%s5 + $0xc] sm:$0xf]
  %v196 = vld [vmem:[%s5 + $0x10] sm:$0xf]
  %v197 = vld [vmem:[%s5 + $0x14] sm:$0xf]
  %v198 = vld [vmem:[%s5 + $0x18] sm:$0xf]
  %v199 = vld [vmem:[%s5 + $0x1c] sm:$0xf]
  %v200 = vld [vmem:[%s5 + $0x20] sm:$0xf]
  %v201 = vld [vmem:[%s5 + $0x24] sm:$0xf]
  %v202 = vld [vmem:[%s5 + $0x28] sm:$0xf]
  %v203 = vld [vmem:[%s5 + $0x2c] sm:$0xf]
  %v204 = vld [vmem:[%s5 + $0x30] sm:$0xf]
  %v205 = vld [vmem:[%s5 + $0x34] sm:$0xf]
  %v206 = vld [vmem:[%s5 + $0x38] sm:$0xf]
  %v207 = vld [vmem:[%s5 + $0x3c] sm:$0xf]
  %v208 = vld [vmem:[%s6] sm:$0x1]
  %v210 = vlaneseq
  %v211 = vshrl.u32 %v210, 7
  %v212 = vsub.s32 0, %v211
  %v213 = vrot.slane %v208, %v212
  %v231 = vunpack.c.l.b16 %v192
  %v232 = vunpack.c.l.b16 %v193
  %v233 = vunpack.c.l.b16 %v194
  %v234 = vunpack.c.l.b16 %v195
  %v235 = vunpack.c.l.b16 %v196
  %v236 = vunpack.c.l.b16 %v197
  %v237 = vunpack.c.l.b16 %v198
  %v238 = vunpack.c.l.b16 %v199
  %v239 = vunpack.c.l.b16 %v200
  %v240 = vunpack.c.l.b16 %v201
  %v241 = vunpack.c.l.b16 %v202
  %v242 = vunpack.c.l.b16 %v203
  %v243 = vunpack.c.l.b16 %v204
  %v244 = vunpack.c.l.b16 %v205
  %v245 = vunpack.c.l.b16 %v206
  %v246 = vunpack.c.l.b16 %v207
  %v247 = vpack.c.b16 %v232, %v231
  %v248 = vpack.c.b16 %v234, %v233
  %v249 = vpack.c.b16 %v236, %v235
  %v250 = vpack.c.b16 %v238, %v237
  %v251 = vpack.c.b16 %v240, %v239
  %v252 = vpack.c.b16 %v242, %v241
  %v253 = vpack.c.b16 %v244, %v243
  %v254 = vpack.c.b16 %v246, %v245
  %263 = vmatprep.subr.bf16.mxu0 0
  %264 = vmatpush1.bf16.msra.mxu0 %v254
  %265 = vmatprep.subr.bf16.mxu0 0
  %266 = vmatpush1.bf16.msra.mxu0 %v253
  %267 = vmatprep.subr.bf16.mxu0 0
  %268 = vmatpush1.bf16.msra.mxu0 %v252
  %269 = vmatprep.subr.bf16.mxu0 0
  %270 = vmatpush1.bf16.msra.mxu0 %v251
  %271 = vmatprep.subr.bf16.mxu0 0
  %272 = vmatpush1.bf16.msra.mxu0 %v250
  %273 = vmatprep.subr.bf16.mxu0 0
  %274 = vmatpush1.bf16.msra.mxu0 %v249
  %275 = vmatprep.subr.bf16.mxu0 0
  %276 = vmatpush1.bf16.msra.mxu0 %v248
  %277 = vmatprep.subr.bf16.mxu0 0
  %278 = vmatpush1.bf16.msra.mxu0 %v247
  %279 = vmatprep.subr.bf16.mxu0 0
  %280 = vmatpush2.bf16.msra.mxu0 0
  %281 = vmatprep.subr.bf16.mxu0 0
  %282 = vmatpush2.bf16.msra.mxu0 0
  %283 = vmatprep.subr.bf16.mxu0 0
  %284 = vmatpush2.bf16.msra.mxu0 0
  %285 = vmatprep.subr.bf16.mxu0 0
  %286 = vmatpush2.bf16.msra.mxu0 0
  %287 = vmatprep.subr.bf16.mxu0 0
  %288 = vmatpush2.bf16.msra.mxu0 0
  %289 = vmatprep.subr.bf16.mxu0 0
  %290 = vmatpush2.bf16.msra.mxu0 0
  %291 = vmatprep.subr.bf16.mxu0 0
  %292 = vmatpush2.bf16.msra.mxu0 0
  %293 = vmatprep.subr.bf16.mxu0 0
  %294 = vmatpush2.bf16.msra.mxu0 0
  %295 = vmatprep.mubr.bf16.mxu0 0
  %296 = vmatmul.mubr.bf16.gmra.mxu0 %v191
  %v297 = vpop.f32.mrf.mxu0
  %v298 = vadd.f32 %v213, %v297
  %v299 = vpop.f32.mrf.mxu0
  %v300 = vpop.f32.mrf.mxu0
  %v301 = vpop.f32.mrf.mxu0
  %302 = vdwg.mxu0
  %vm303 = vcmask 15360
  %304 = vst.msk [vmem:[%s7] sm:$0xff] %vm303, %v298
  // Predicated region
  $region30: #{dqn_forward.1} parent=0 // pred_check
    _
  $region31: #{dqn_forward.1} parent=0 // pred_check_branch
    %306 = sbr.rel (0) target = $region33
  $region32: #{dqn_forward.1} parent=0 // pred_region
    _
  $region33: #{dqn_forward.1} parent=0 // pred_fallthru
    _
  // Predicated region
  $region34: #{dqn_forward.1} parent=0 // pred_check
    _
  $region35: #{dqn_forward.1} parent=0 // pred_check_branch
    %308 = sbr.rel (0) target = $region37
  $region36: #{dqn_forward.1} parent=0 // pred_region
    _
  $region37: #{dqn_forward.1} parent=0 // pred_fallthru
    _

</llo_original>
